<compile_context>
chip_gen: v7x
topology: tpu7x:2x2x1
jax: 0.10.0
libtpu: 0.0.40
codegen_flags: <defaults>
</compile_context>

<pallas_src>
import functools
import math

import jax
import jax.numpy as jnp
from jax.experimental import pallas as pl
from jax.experimental.pallas import tpu as pltpu

EPS = 1e-6

# Pipeline-buffer budget and explicit scoped-VMEM limit (safe on v5e/v6e/v7x: the
# 48 MiB limit is above the 16/32 MiB scoped defaults and below v7x's 64 MiB physical).
_TILE_VMEM_BUDGET = 24 * 1024 * 1024
_VMEM_LIMIT_BYTES = 48 * 1024 * 1024


def _cdiv(a, b):
    return -(-a // b)


def _round_up(v, m):
    return ((v + m - 1) // m) * m


def _round_down_128(v):
    return max(128, (v // 128) * 128)


def _lane_budget_tile(bytes_per_lane, max_tile, vmem_budget):
    """Largest multiple-of-128 lane extent whose pipeline buffers fit the budget."""
    t = max(128, vmem_budget // max(1, bytes_per_lane))
    return _round_down_128(min(max_tile, t))


def _pick_flat_tile(batch, total, bytes_per_lane, max_tile, vmem_budget):
    t = _lane_budget_tile(bytes_per_lane, max_tile, vmem_budget)
    if total <= t:
        t = total  # full-extent block is always legal
        # v7x has 2 TensorCores: keep >=2 "parallel" grid steps for a lone batch.
        if batch == 1 and total >= 256:
            t = _round_up(_cdiv(total, 2), 128)
    else:
        # Prefer a tile that divides the extent evenly (no masked partial last tile),
        # as long as it doesn't shrink the tile below half the budget tile.
        for cand in range(t, t // 2, -128):
            if total % cand == 0:
                t = cand
                break
    return t


# ---------------------------------------------------------------------------
# VNLinear
# ---------------------------------------------------------------------------
def _vn_linear_kernel(w_ref, x_ref, o_ref):
    # w_ref: [C_out, C_in] (VMEM-resident), x_ref: [C_in, T], o_ref: [C_out, T]
    o_ref[...] = jnp.dot(
        w_ref[...], x_ref[...], preferred_element_type=jnp.float32
    ).astype(o_ref.dtype)


def vn_linear(x, weight, *, max_tile=8192, vmem_budget_bytes=_TILE_VMEM_BUDGET):
    """VNLinear.forward: out[b,o,...] = sum_i W[o,i] * x[b,i,...].

    x:      [B, C_in, 3, N, ...]   (PyTorch layout, any trailing spatial dims)
    weight: [C_out, C_in]
    """
    B, c_in = x.shape[0], x.shape[1]
    c_out = weight.shape[0]
    trailing = x.shape[2:]
    total = math.prod(trailing) if trailing else 1

    weight = weight.astype(x.dtype)       # bf16 weights for bf16 activations
    x3 = x.reshape(B, c_in, total)        # free reshape, no transpose

    itemsize = jnp.dtype(x.dtype).itemsize
    # double-buffered in+out tiles plus the f32 matmul result, per lane-column
    bytes_per_lane = 2 * (c_in + c_out) * itemsize + c_out * 4
    t = _pick_flat_tile(B, total, bytes_per_lane, max_tile, vmem_budget_bytes)
    grid = (B, _cdiv(total, t))

    cost = pl.CostEstimate(
        flops=2 * B * c_out * c_in * total,
        transcendentals=0,
        bytes_accessed=(B * (c_in + c_out) * total + c_out * c_in) * itemsize,
    )

    y = pl.pallas_call(
        _vn_linear_kernel,
        out_shape=jax.ShapeDtypeStruct((B, c_out, total), x.dtype),
        grid=grid,
        in_specs=[
            pl.BlockSpec((c_out, c_in), lambda b, j: (0, 0)),       # resident weight
            pl.BlockSpec((None, c_in, t), lambda b, j: (b, 0, j)),  # streamed x tile
        ],
        out_specs=pl.BlockSpec((None, c_out, t), lambda b, j: (b, 0, j)),
        compiler_params=pltpu.CompilerParams(
            dimension_semantics=("parallel", "parallel"),
            vmem_limit_bytes=_VMEM_LIMIT_BYTES,
        ),
        cost_estimate=cost,
    )(weight, x3)
    return y.reshape((B, c_out) + trailing)


# ---------------------------------------------------------------------------
# Fused VNLinearLeakyReLU (use_batchnorm=False)
# ---------------------------------------------------------------------------
def _vn_linear_leaky_relu_kernel(negative_slope, eps,
                                 wp_ref, wd_ref, x0_ref, x1_ref, x2_ref,
                                 o0_ref, o1_ref, o2_ref):
    wp = wp_ref[...]                      # [C_out, C_in]
    wd = wd_ref[...]                      # [C_dir, C_in]
    xs = (x0_ref[...], x1_ref[...], x2_ref[...])   # three [C_in, T] d-planes
    # p = map_to_feat(x), d = map_to_dir(x): both matmuls reuse the single DMA of each
    # x tile (the point of the fusion); f32 accumulation on the MXU.
    ps = [jnp.dot(wp, xd, preferred_element_type=jnp.float32) for xd in xs]
    ds = [jnp.dot(wd, xd, preferred_element_type=jnp.float32) for xd in xs]
    # <p,d> and |d|^2 over the 3-vector axis: planes are separate 2-D slabs, so these
    # are plain VPU multiply-adds (no cross-sublane reduction).
    dotprod = ps[0] * ds[0] + ps[1] * ds[1] + ps[2] * ds[2]
    d_norm_sq = ds[0] * ds[0] + ds[1] * ds[1] + ds[2] * ds[2]
    scale = dotprod / (d_norm_sq + eps)
    is_neg = dotprod < 0.0
    for o_ref, p, d in zip((o0_ref, o1_ref, o2_ref), ps, ds):
        out = negative_slope * p + (1.0 - negative_slope) * jnp.where(
            is_neg, p - scale * d, p)
        o_ref[...] = out.astype(o_ref.dtype)


def vn_linear_leaky_relu(x, w_feat, w_dir, *, negative_slope=0.2, eps=EPS,
                         max_tile=4096, vmem_budget_bytes=_TILE_VMEM_BUDGET):
    """Fused VNLinearLeakyReLU.forward with use_batchnorm=False.

    x:      [B, C_in, 3, N, ...]
    w_feat: [C_out, C_in]   (map_to_feat.weight)
    w_dir:  [C_dir, C_in]   (map_to_dir.weight; C_dir == C_out, or 1 if shared)
    """
    B, c_in, three = x.shape[0], x.shape[1], x.shape[2]
    assert three == 3, "vector-neuron features must have a 3-axis at dim 2"
    spatial = x.shape[3:]
    n = math.prod(spatial) if spatial else 1
    c_out, c_dir = w_feat.shape[0], w_dir.shape[0]

    w_feat = w_feat.astype(x.dtype)
    w_dir = w_dir.astype(x.dtype)

    itemsize = jnp.dtype(x.dtype).itemsize
    # per lane-column: double-buffered 3 x-tiles + 3 out-tiles, plus live f32 p/d temps
    bytes_per_lane = 2 * 3 * (c_in + c_out) * itemsize + 8 * c_out * 4
    t = _lane_budget_tile(bytes_per_lane, max_tile, vmem_budget_bytes)
    t = min(t, _round_up(n, 128))
    # v7x megacore: keep >=2 grid steps when a lone batch would otherwise be one step.
    if B == 1 and n >= 256 and _round_up(n, t) // t < 2:
        t = _round_down_128(t // 2)
    # Pad N so the tile divides it exactly: every block is lane-dense/unmasked and lies
    # entirely inside one d-plane of the flat [C_in, 3*N] layout (still zero transposes).
    n_pad = _round_up(n, t)
    x4 = x.reshape(B, c_in, 3, n)
    if n_pad != n:
        x4 = jnp.pad(x4, ((0, 0), (0, 0), (0, 0), (0, n_pad - n)))
    x3 = x4.reshape(B, c_in, 3 * n_pad)
    bpp = n_pad // t                      # blocks per d-plane along the flat 3N axis
    grid = (B, bpp)

    def x_spec(plane):
        # Same x array three times: the three d-planes of one n-range are three blocks
        # of the flat [B, C_in, 3*N_pad] array, offset by `plane * bpp` block indices.
        return pl.BlockSpec((None, c_in, t),
                            lambda b, j, plane=plane: (b, 0, j + plane * bpp))

    out_spec = pl.BlockSpec((None, c_out, t), lambda b, j: (b, 0, j))
    cost = pl.CostEstimate(
        flops=2 * B * (c_out + c_dir) * c_in * 3 * n_pad + 10 * B * c_out * 3 * n_pad,
        transcendentals=0,
        bytes_accessed=(B * (c_in + c_out) * 3 * n_pad
                        + (c_out + c_dir) * c_in) * itemsize,
    )

    kernel = functools.partial(_vn_linear_leaky_relu_kernel,
                               float(negative_slope), float(eps))
    planes = pl.pallas_call(
        kernel,
        out_shape=tuple(jax.ShapeDtypeStruct((B, c_out, n_pad), x.dtype)
                        for _ in range(3)),
        grid=grid,
        in_specs=[
            pl.BlockSpec((c_out, c_in), lambda b, j: (0, 0)),   # resident map_to_feat W
            pl.BlockSpec((c_dir, c_in), lambda b, j: (0, 0)),   # resident map_to_dir W
            x_spec(0), x_spec(1), x_spec(2),
        ],
        out_specs=(out_spec, out_spec, out_spec),
        compiler_params=pltpu.CompilerParams(
            dimension_semantics=("parallel", "parallel"),
            vmem_limit_bytes=_VMEM_LIMIT_BYTES,
        ),
        cost_estimate=cost,
    )(w_feat, w_dir, x3, x3, x3)

    y = jnp.stack(planes, axis=2)         # [B, C_out, 3, n_pad]
    y = y[..., :n]
    return y.reshape((B, c_out, 3) + spatial)


# ---------------------------------------------------------------------------
# References (plain JAX) + tests
# ---------------------------------------------------------------------------
def _ref_vn_linear(x, w):
    return jnp.einsum("oi,bidn->bodn", w, x)


def _ref_vn_linear_leaky_relu(x, wf, wd, negative_slope=0.2, eps=EPS):
    p = jnp.einsum("oi,bidn->bodn", wf, x)
    d = jnp.einsum("oi,bidn->bodn", wd, x)
    dot = (p * d).sum(2, keepdims=True)
    dnsq = (d * d).sum(2, keepdims=True)
    mask = (dot >= 0).astype(p.dtype)
    return negative_slope * p + (1 - negative_slope) * (
        mask * p + (1 - mask) * (p - dot / (dnsq + eps) * d))


if __name__ == "__main__":
    keys = jax.random.split(jax.random.PRNGKey(0), 10)

    # --- VNLinear: tiny single-tile case ---
    B, c_in, c_out, n = 2, 4, 8, 16
    x = jax.random.normal(keys[0], (B, c_in, 3, n), dtype=jnp.float32)
    w = jax.random.uniform(keys[1], (c_out, c_in), minval=-0.5, maxval=0.5,
                           dtype=jnp.float32)
    out = jax.block_until_ready(vn_linear(x, w))
    assert out.shape == (B, c_out, 3, n)
    assert jnp.allclose(out, _ref_vn_linear(x, w), atol=1e-5, rtol=1e-5)

    # --- VNLinear: multi-tile grid with a masked partial last tile (3N = 300) ---
    B, c_in, c_out, n = 2, 8, 16, 100
    x = jax.random.normal(keys[2], (B, c_in, 3, n), dtype=jnp.float32)
    w = jax.random.uniform(keys[3], (c_out, c_in), minval=-0.35, maxval=0.35,
                           dtype=jnp.float32)
    out = jax.block_until_ready(vn_linear(x, w, max_tile=128))
    assert jnp.allclose(out, _ref_vn_linear(x, w), atol=1e-5, rtol=1e-5)

    # --- VNLinear: bf16 activations, f32 weight cast to bf16 inside the wrapper ---
    B, c_in, c_out, n = 2, 8, 16, 128
    xb = jax.random.normal(keys[4], (B, c_in, 3, n),
                           dtype=jnp.float32).astype(jnp.bfloat16)
    wf32 = jax.random.uniform(keys[5], (c_out, c_in), minval=-0.35, maxval=0.35,
                              dtype=jnp.float32)
    outb = jax.block_until_ready(vn_linear(xb, wf32))
    refb = _ref_vn_linear(xb.astype(jnp.float32),
                          wf32.astype(jnp.bfloat16).astype(jnp.float32))
    assert outb.dtype == jnp.bfloat16
    assert jnp.allclose(outb.astype(jnp.float32), refb, atol=2e-2, rtol=2e-2)

    # --- Fused VNLinearLeakyReLU: 2 N-tiles per batch, everything unmasked ---
    B, c_in, c_out, n = 2, 6, 8, 256
    x = jax.random.normal(keys[6], (B, c_in, 3, n), dtype=jnp.float32)
    wf = jax.random.uniform(keys[7], (c_out, c_in), minval=-0.4, maxval=0.4,
                            dtype=jnp.float32)
    wd = jax.random.uniform(keys[8], (c_out, c_in), minval=-0.4, maxval=0.4,
                            dtype=jnp.float32)
    out = jax.block_until_ready(vn_linear_leaky_relu(x, wf, wd, max_tile=128))
    ref = _ref_vn_linear_leaky_relu(x, wf, wd)
    assert out.shape == (B, c_out, 3, n)
    assert jnp.allclose(out, ref, atol=2e-5, rtol=2e-5)

    # --- Fused VNLinearLeakyReLU: B=1 (megacore split) + N padded to tile multiple ---
    B, c_in, c_out, n = 1, 4, 6, 300
    x = jax.random.normal(keys[9], (B, c_in, 3, n), dtype=jnp.float32)
    wf = jax.random.uniform(keys[1], (c_out, c_in), minval=-0.5, maxval=0.5,
                            dtype=jnp.float32)
    wd = jax.random.uniform(keys[3], (c_out, c_in), minval=-0.5, maxval=0.5,
                            dtype=jnp.float32)
    out = jax.block_until_ready(vn_linear_leaky_relu(x, wf, wd))
    ref = _ref_vn_linear_leaky_relu(x, wf, wd)
    assert out.shape == (B, c_out, 3, n)
    assert jnp.allclose(out, ref, atol=2e-5, rtol=2e-5)

    print("KERNEL_OK")
</pallas_src>

<mosaic_0001>
module attributes {stable_mosaic.version = 11 : i64} {
  func.func @_vn_linear_kernel(%arg0: i32, %arg1: i32, %arg2: memref<8x4xf32, #tpu.memory_space<vmem>>, %arg3: memref<1x4x48xf32, #tpu.memory_space<vmem>>, %arg4: memref<1x8x48xf32, #tpu.memory_space<vmem>>) attributes {dimension_semantics = [#tpu.dimension_semantics<parallel>, #tpu.dimension_semantics<parallel>], iteration_bounds = array<i64: 2, 1>, scalar_prefetch = 0 : i64, scratch_operands = 0 : i64, tpu.core_type = #tpu.core_type<tc>, window_params = [{pipeline_mode = #tpu.pipeline_mode<synchronous>, transform_indices = @transform_0, window_bounds = array<i64: 8, 4>}, {transform_indices = @transform_1, window_bounds = array<i64: 1, 4, 48>}, {transform_indices = @transform_2, window_bounds = array<i64: 1, 8, 48>}]} {
    %c0 = arith.constant 0 : index
    %c0_0 = arith.constant 0 : index
    %0 = vector.load %arg2[%c0, %c0_0] : memref<8x4xf32, #tpu.memory_space<vmem>>, vector<8x4xf32>
    %c0_1 = arith.constant 0 : index
    %c0_2 = arith.constant 0 : index
    %c0_3 = arith.constant 0 : index
    %1 = vector.load %arg3[%c0_1, %c0_2, %c0_3] : memref<1x4x48xf32, #tpu.memory_space<vmem>>, vector<1x4x48xf32>
    %2 = vector.shape_cast %1 : vector<1x4x48xf32> to vector<4x48xf32>
    %cst = arith.constant dense<0.000000e+00> : vector<8x48xf32>
    %3 = tpu.matmul %0, %2, %cst {dimension_numbers = #tpu.dot_dimension_numbers<[1], [0], [0], [1], [0, 0, 1, 1], [], []>} : vector<8x4xf32>, vector<4x48xf32>, vector<8x48xf32> -> vector<8x48xf32>
    %c0_4 = arith.constant 0 : index
    %c0_5 = arith.constant 0 : index
    %c0_6 = arith.constant 0 : index
    %4 = vector.load %arg4[%c0_4, %c0_5, %c0_6] : memref<1x8x48xf32, #tpu.memory_space<vmem>>, vector<1x8x48xf32>
    %5 = vector.shape_cast %4 : vector<1x8x48xf32> to vector<8x48xf32>
    %6 = vector.shape_cast %3 : vector<8x48xf32> to vector<1x8x48xf32>
    tpu.vector_store %arg4[%c0_4, %c0_5, %c0_6], %6 {strides = array<i32>} : memref<1x8x48xf32, #tpu.memory_space<vmem>>, vector<1x8x48xf32>,
    return
  }
  func.func @transform_0(%arg0: i32, %arg1: i32) -> (i32, i32) {
    %c0_i32 = arith.constant 0 : i32
    %c0_i32_0 = arith.constant 0 : i32
    %c0_i32_1 = arith.constant 0 : i32
    return %c0_i32, %c0_i32_0 : i32, i32
  }
  func.func @transform_1(%arg0: i32, %arg1: i32) -> (i32, i32, i32) {
    %c0_i32 = arith.constant 0 : i32
    %c0_i32_0 = arith.constant 0 : i32
    return %arg0, %c0_i32, %arg1 : i32, i32, i32
  }
  func.func @transform_2(%arg0: i32, %arg1: i32) -> (i32, i32, i32) {
    %c0_i32 = arith.constant 0 : i32
    %c0_i32_0 = arith.constant 0 : i32
    return %arg0, %c0_i32, %arg1 : i32, i32, i32
  }
}

</mosaic_0001>

<llo_original>
// kernel: tpu_custom_call.1
$region0: #{tpu_custom_call.1}
  #allocation0 [shape = 'u32[]', space=smem, size = 0x4, offset = 0x4, fixed_abs, tag = 'smem constant byte address 0x4 - core index']
  #allocation1 [shape = 'u32[144,128]{1,0:T(1,128)}', space=vmem, size = 0x12000, scoped, tag = 'internal scratch']
  %s0 = inlined_call_operand.vmem [shape: f32[8,4], index: 0, kind: input, shape index: {}]
  %s1 = inlined_call_operand.vmem [shape: f32[2,4,48], index: 1, kind: input, shape index: {}]
  %s2 = inlined_call_operand.hbm [shape: f32[2,8,48], index: 2, kind: output, shape index: {}]
  %s3 = sld [smem:[#allocation0]]
  $region41: #{tpu_custom_call.1} parent=0
    _
  %s5 = ssub.s32 1, %s3
  %s6 = scalar_select 0, %s5, %s3
  $region1: #{tpu_custom_call.1} parent=0
    #allocation2 [shape = 'u8[8192]{0}', space=vmem, size = 0x2000, scoped, tag = 'output window, operand 0']
    #allocation3 [shape = 's32[2]{0}', space=sflag, size = 0x8, scoped, tag = 'scoped memory for tpu_custom_call.1']
    %7 = vsyncpa [#allocation3], 0
    %s8 = scalar_lea.sflag [#allocation3], 1
    %9 = vsyncpa %s8, 0
    loop: start=0, step=1, limit=4
    $region2: #{tpu_custom_call.1} parent=1 // loop_pre_header
      _
    $region3: #{tpu_custom_call.1} parent=1 // loop_header
      %s11 = sphi 0, %s15
      %p12 = scmp.ge.s32.totalorder %s11, 4
      %s18 = sphi 0, %s30
      %s19 = sphi 0, %s26
      %s20 = sphi 0, %s18
      %s21 = sphi 0, %s19
      %s22 = sphi 0, %s20
      %s23 = sphi 0, %s21
      %s31 = sphi 0, %s31
      %s33 = sphi 0, %s31
      %s34 = sphi 0, %s33
      %s48 = sphi 0, %s34
      %s56 = sphi 0, %s58
      %s59 = sphi 0, %s56
      %s60 = sphi 0, %s59
      %s76 = sphi 0, %s60
      %s84 = sphi 0, %s86
      %s87 = sphi 0, %s84
      %s88 = sphi 0, %s87
      %s104 = sphi 0, %s88
    $region4: #{tpu_custom_call.1} parent=1 // loop_header_branch
      %14 = sbr.rel (%p12) target = $region8
    $region5: #{tpu_custom_call.1} parent=1 // loop_body
      %s16 = ssub.s32 %s11, 1
      %s17 = ssub.s32 %s11, 2
      %s24 = sadd.s32 1, %s19
      %p25 = scmp.ge.s32.totalorder %s24, 1
      %s26 = scalar_select %p25, 0, %s24
      %s27 = sadd.s32 1, %s18
      %s28 = scalar_select %p25, %s27, %s18
      %p29 = scmp.ge.s32.totalorder %s28, 2
      %s30 = scalar_select %p29, 0, %s28
      %s32 = sadd.s32 %s31, 1
      %p35 = scmp.eq.s32.totalorder %s11, 1
      %p36 = scmp.ne.s32.totalorder %s31, %s33
      %p37 = scmp.eq.s32.totalorder %s11, 0
      %p38 = por %p36, %p37
      %p39 = scmp.ne.s32.totalorder %s31, %s33
      %p40 = scmp.eq.s32.totalorder %s16, 1
      %p41 = por %p39, %p40
      %p42 = scmp.ne.s32.totalorder %s33, %s34
      %p43 = scmp.eq.s32.totalorder %s16, 0
      %p44 = por %p42, %p43
      %p45 = scmp.ne.s32.totalorder %s33, %s34
      %p46 = scmp.eq.s32.totalorder %s17, 1
      %p47 = por %p45, %p46
      %p49 = scmp.ne.s32.totalorder %s34, %s48
      %p50 = scmp.eq.s32.totalorder %s17, 0
      %p51 = por %p49, %p50
      %s52 = ssub.s32 %s18, %s30
      %s53 = ssub.s32 %s19, %s26
      %s54 = sor.u32 %s52, %s53
      %p55 = scmp.eq.s32.totalorder %s54, 0
      %s57 = sadd.s32 %s56, 1
      %s58 = scalar_select %p55, %s56, %s57
      %p61 = pneg %p55
      %p62 = scmp.eq.s32.totalorder %s11, 1
      %p63 = por %p61, %p62
      %p64 = scmp.ne.s32.totalorder %s56, %s59
      %p65 = scmp.eq.s32.totalorder %s11, 0
      %p66 = por %p64, %p65
      %p67 = scmp.ne.s32.totalorder %s56, %s59
      %p68 = scmp.eq.s32.totalorder %s16, 1
      %p69 = por %p67, %p68
      %p70 = scmp.ne.s32.totalorder %s59, %s60
      %p71 = scmp.eq.s32.totalorder %s16, 0
      %p72 = por %p70, %p71
      %p73 = scmp.ne.s32.totalorder %s59, %s60
      %p74 = scmp.eq.s32.totalorder %s17, 1
      %p75 = por %p73, %p74
      %p77 = scmp.ne.s32.totalorder %s60, %s76
      %p78 = scmp.eq.s32.totalorder %s17, 0
      %p79 = por %p77, %p78
      %s80 = ssub.s32 %s18, %s30
      %s81 = ssub.s32 %s19, %s26
      %s82 = sor.u32 %s80, %s81
      %p83 = scmp.eq.s32.totalorder %s82, 0
      %s85 = sadd.s32 %s84, 1
      %s86 = scalar_select %p83, %s84, %s85
      %p89 = pneg %p83
      %p90 = scmp.eq.s32.totalorder %s11, 1
      %p91 = por %p89, %p90
      %p92 = scmp.ne.s32.totalorder %s84, %s87
      %p93 = scmp.eq.s32.totalorder %s11, 0
      %p94 = por %p92, %p93
      %p95 = scmp.ne.s32.totalorder %s84, %s87
      %p96 = scmp.eq.s32.totalorder %s16, 1
      %p97 = por %p95, %p96
      %p98 = scmp.ne.s32.totalorder %s87, %s88
      %p99 = scmp.eq.s32.totalorder %s16, 0
      %p100 = por %p98, %p99
      %p101 = scmp.ne.s32.totalorder %s87, %s88
      %p102 = scmp.eq.s32.totalorder %s17, 1
      %p103 = por %p101, %p102
      %p105 = scmp.ne.s32.totalorder %s88, %s104
      %p106 = scmp.eq.s32.totalorder %s17, 0
      %p107 = por %p105, %p106
      %p108 = scmp.le.s32.totalorder 1, %s11
      %p109 = scmp.lt.s32.totalorder %s11, 3
      %p110 = pnand %p108, %p109
      %p111 = pneg %p110
      // Predicated region
      $region9: #{tpu_custom_call.1} parent=5 // pred_check
        _
      $region10: #{tpu_custom_call.1} parent=5 // pred_check_branch
        %113 = sbr.rel (%p110) target = $region12
      $region11: #{tpu_custom_call.1} parent=5 // pred_region
        %s114 = ssub.s32 %s11, 1
        // Predicated region
        $region13: #{tpu_custom_call.1} parent=11 // pred_check
          %p115 = pneg %p44
        $region14: #{tpu_custom_call.1} parent=11 // pred_check_branch
          %117 = sbr.rel (%p115) target = $region16
        $region15: #{tpu_custom_call.1} parent=11 // pred_region
          _
        $region16: #{tpu_custom_call.1} parent=11 // pred_fallthru
          _
      $region12: #{tpu_custom_call.1} parent=5 // pred_fallthru
        _
      %p118 = scmp.lt.s32.totalorder %s11, 2
      // Predicated region
      $region17: #{tpu_custom_call.1} parent=5 // pred_check
        %p119 = pneg %p118
      $region18: #{tpu_custom_call.1} parent=5 // pred_check_branch
        %121 = sbr.rel (%p119) target = $region20
      $region19: #{tpu_custom_call.1} parent=5 // pred_region
        // Predicated region
        $region21: #{tpu_custom_call.1} parent=19 // pred_check
          %p122 = pneg %p66
        $region22: #{tpu_custom_call.1} parent=19 // pred_check_branch
          %124 = sbr.rel (%p122) target = $region24
        $region23: #{tpu_custom_call.1} parent=19 // pred_region
          %p125 = scmp.lt.s32.totalorder %s18, 1
          %s126 = scalar_select %p125, %s18, 1
          %p127 = scmp.lt.s32.totalorder %s19, 0
          %s128 = scalar_select %p127, %s19, 0
          %s129 = sadd.s32 %s128, %s126
          %s130 = smul.addr %s129, 4
          %s131 = scalar_lea.vmem %s1, %s130
        $region24: #{tpu_custom_call.1} parent=19 // pred_fallthru
          _
      $region20: #{tpu_custom_call.1} parent=5 // pred_fallthru
        _
      %p132 = scmp.le.s32.totalorder 1, %s11
      %p133 = scmp.lt.s32.totalorder %s11, 3
      %p134 = pnand %p132, %p133
      %p135 = pneg %p134
      // Predicated region
      $region25: #{tpu_custom_call.1} parent=5 // pred_check
        _
      $region26: #{tpu_custom_call.1} parent=5 // pred_check_branch
        %137 = sbr.rel (%p134) target = $region28
      $region27: #{tpu_custom_call.1} parent=5 // pred_region
        %s138 = ssub.s32 %s11, 1
        %p139 = pneg %p44
        %p140 = pneg %p41
        %p141 = scmp.lt.s32.totalorder %s20, 1
        %s142 = scalar_select %p141, %s20, 1
        %p143 = scmp.lt.s32.totalorder %s21, 0
        %s144 = scalar_select %p143, %s21, 0
        %s145 = sadd.s32 %s144, %s142
        %s146 = smul.addr %s145, 4
        %s147 = scalar_lea.vmem %s1, %s146
        %p148 = pneg %p72
        %p149 = pneg %p69
        %p150 = pneg %p100
        %p151 = pneg %p97
        %s152 = sand.u32 %s87, 1
        %s153 = scalar_lea.sflag [#allocation3], %s152
        %s154 = sand.u32 %s87, 1
        %s155 = smul.addr %s154, 8
        %s156 = scalar_lea.vmem [#allocation2], %s155
        %p157 = scmp.lt.s32.totalorder %s20, 1
        %s158 = scalar_select %p157, %s20, 1
        %p159 = scmp.lt.s32.totalorder %s21, 0
        %s160 = scalar_select %p159, %s21, 0
        %s161 = sadd.s32 %s160, %s158
        %s162 = smul.addr %s161, 4
        %s163 = scalar_lea.vmem %s1, %s162
        %v164 = vld [vmem:[%s0] sm:$0xff]
        %v165 = vld [vmem:[%s163] sm:$0xf]
        %vm166 = vcmask 31744
        %v168 = vsel %vm166, %v164, 0
        %vm170 = vcmask 1043456
        %v172 = vsel %vm170, %v165, 0
        %174 = vmatprep.subr.mxu0 0.0
        %175 = vmatpush1.msra.mxu0 %v172
        %176 = vmatprep.subr.mxu0 0.0
        %177 = vmatpush1.msra.mxu0 0.0
        %178 = vmatprep.subr.mxu0 0.0
        %179 = vmatpush1.msra.mxu0 0.0
        %180 = vmatprep.subr.mxu0 0.0
        %181 = vmatpush1.msra.mxu0 0.0
        %182 = vmatprep.subr.mxu0 0.0
        %183 = vmatpush1.msra.mxu0 0.0
        %184 = vmatprep.subr.mxu0 0.0
        %185 = vmatpush1.msra.mxu0 0.0
        %186 = vmatprep.subr.mxu0 0.0
        %187 = vmatpush1.msra.mxu0 0.0
        %188 = vmatprep.subr.mxu0 0.0
        %189 = vmatpush1.msra.mxu0 0.0
        %190 = vmatprep.subr.mxu0 0.0
        %191 = vmatpush1.msra.mxu0 0.0
        %192 = vmatprep.subr.mxu0 0.0
        %193 = vmatpush1.msra.mxu0 0.0
        %194 = vmatprep.subr.mxu0 0.0
        %195 = vmatpush1.msra.mxu0 0.0
        %196 = vmatprep.subr.mxu0 0.0
        %197 = vmatpush1.msra.mxu0 0.0
        %198 = vmatprep.subr.mxu0 0.0
        %199 = vmatpush1.msra.mxu0 0.0
        %200 = vmatprep.subr.mxu0 0.0
        %201 = vmatpush1.msra.mxu0 0.0
        %202 = vmatprep.subr.mxu0 0.0
        %203 = vmatpush1.msra.mxu0 0.0
        %204 = vmatprep.subr.mxu0 0.0
        %205 = vmatpush1.msra.mxu0 0.0
        %206 = vmatprep.subr.mxu0 0.0
        %207 = vmatpush1.msra.mxu0 0.0
        %208 = vmatprep.subr.mxu0 0.0
        %209 = vmatpush1.msra.mxu0 0.0
        %210 = vmatprep.subr.mxu0 0.0
        %211 = vmatpush1.msra.mxu0 0.0
        %212 = vmatprep.subr.mxu0 0.0
        %213 = vmatpush1.msra.mxu0 0.0
        %214 = vmatprep.subr.mxu0 0.0
        %215 = vmatpush1.msra.mxu0 0.0
        %216 = vmatprep.subr.mxu0 0.0
        %217 = vmatpush1.msra.mxu0 0.0
        %218 = vmatprep.subr.mxu0 0.0
        %219 = vmatpush1.msra.mxu0 0.0
        %220 = vmatprep.subr.mxu0 0.0
        %221 = vmatpush1.msra.mxu0 0.0
        %222 = vmatprep.subr.mxu0 0.0
        %223 = vmatpush1.msra.mxu0 0.0
        %224 = vmatprep.subr.mxu0 0.0
        %225 = vmatpush1.msra.mxu0 0.0
        %226 = vmatprep.subr.mxu0 0.0
        %227 = vmatpush1.msra.mxu0 0.0
        %228 = vmatprep.subr.mxu0 0.0
        %229 = vmatpush1.msra.mxu0 0.0
        %230 = vmatprep.subr.mxu0 0.0
        %231 = vmatpush1.msra.mxu0 0.0
        %232 = vmatprep.subr.mxu0 0.0
        %233 = vmatpush1.msra.mxu0 0.0
        %234 = vmatprep.subr.mxu0 0.0
        %235 = vmatpush1.msra.mxu0 0.0
        %236 = vmatprep.subr.mxu0 0.0
        %237 = vmatpush1.msra.mxu0 0.0
        %238 = vmatprep.mubr.f32.mxu0 0.0
        %239 = vmatmul.mubr.f32.gmra.mrb[0].mxu0 %v168
        %v240 = vpop.f32.mrb[0].mxu0
        %v241 = vadd.f32 0.0, %v240
        %v242 = vpop.f32.mrb[0].mxu0
        %243 = vdwg.mxu0
        %vm244 = vcmask 392192
        %245 = vst.msk [vmem:[%s156] sm:$0xff] %vm244, %v241
        %s246 = sand.u32 %s87, 1
        %s247 = scalar_lea.sflag [#allocation3], %s246
        %s248 = sand.u32 %s87, 1
        %s249 = smul.addr %s248, 8
        %s250 = scalar_lea.vmem [#allocation2], %s249
        // Predicated region
        $region29: #{tpu_custom_call.1} parent=27 // pred_check
          %p251 = pneg %p97
        $region30: #{tpu_custom_call.1} parent=27 // pred_check_branch
          %253 = sbr.rel (%p251) target = $region32
        $region31: #{tpu_custom_call.1} parent=27 // pred_region
          %s255 = ssub.s32 128, 128
          %256 = vsyncadd %s247, %s255
          %s257 = sadd.s32 %s21, %s20
          %s258 = smul.addr %s257, 128
          %s259 = scalar_lea.hbm %s2, %s258
          %s261 = sshll.u32 %s250, 4
          %s262 = int_to_ptr.vmem [resolvable:$true] %s261
          %264 = dma.vmem_to_hbm [thread:$0]  %s262, 128, %s259, %s247
        $region32: #{tpu_custom_call.1} parent=27 // pred_fallthru
          _
      $region28: #{tpu_custom_call.1} parent=5 // pred_fallthru
        _
      %p265 = scmp.le.s32.totalorder 2, %s11
      // Predicated region
      $region33: #{tpu_custom_call.1} parent=5 // pred_check
        %p266 = pneg %p265
      $region34: #{tpu_custom_call.1} parent=5 // pred_check_branch
        %268 = sbr.rel (%p266) target = $region36
      $region35: #{tpu_custom_call.1} parent=5 // pred_region
        %s269 = ssub.s32 %s11, 2
        // Predicated region
        $region37: #{tpu_custom_call.1} parent=35 // pred_check
          %p270 = pneg %p103
        $region38: #{tpu_custom_call.1} parent=35 // pred_check_branch
          %272 = sbr.rel (%p270) target = $region40
        $region39: #{tpu_custom_call.1} parent=35 // pred_region
          %s273 = sand.u32 %s88, 1
          %s274 = scalar_lea.sflag [#allocation3], %s273
          %s275 = sand.u32 %s88, 1
          %s276 = smul.addr %s275, 8
          %s277 = scalar_lea.vmem [#allocation2], %s276
          %278 = dma.done %s274, 128
        $region40: #{tpu_custom_call.1} parent=35 // pred_fallthru
          _
      $region36: #{tpu_custom_call.1} parent=5 // pred_fallthru
        _
    $region6: #{tpu_custom_call.1} parent=1 // loop_footer
      %s15 = sadd.s32 1, %s11
    $region7: #{tpu_custom_call.1} parent=1 // loop_footer_branch
      %10 = sbr.rel target = $region3
    $region8: #{tpu_custom_call.1} parent=1 // loop_exit
      _
    %279 = vsyncpa [#allocation3], 1
    %s280 = scalar_lea.sflag [#allocation3], 1
    %281 = vsyncpa %s280, 1

</llo_original>
